<compile_context>
chip_gen: v7x
topology: tpu7x:2x2x1
jax: 0.10.0
libtpu: 0.0.40
codegen_flags: <defaults>
</compile_context>

<pallas_src>
import math

import jax
import jax.numpy as jnp
from jax.experimental import pallas as pl
from jax.experimental.pallas import tpu as pltpu


def _round_up(a, m):
    return ((a + m - 1) // m) * m


# ---------------------------------------------------------------------------
# Kernel
# ---------------------------------------------------------------------------
def selector_logits_kernel(x_ref, w_ref, b_ref, out_ref):
    # x_ref: (tm, K); w_ref: (K, tn)  (already w = weight.T); b_ref: (1, tn).
    # Plain NN matmul on the MXU with f32 accumulation; bias add on the VPU.
    prec = jax.lax.Precision.HIGHEST if x_ref.dtype == jnp.float32 else None
    acc = jnp.dot(x_ref[...], w_ref[...],
                  preferred_element_type=jnp.float32, precision=prec)
    out_ref[...] = (acc + b_ref[...].astype(jnp.float32)).astype(out_ref.dtype)


# ---------------------------------------------------------------------------
# Parameter prep (hoist out of the per-call path and cache: params are static)
# ---------------------------------------------------------------------------
def prepare_selector_params(weight, bias, compute_dtype=None):
    """weight: (num_classes, relation_dim), bias: (num_classes,).

    Returns (w, bias2d) with w = weight.T (the `w` PyTorch returns) and bias
    reshaped to (1, num_classes).  Do this once per parameter update and reuse
    across get_logits calls so the transpose/cast never costs per-call HBM."""
    if compute_dtype is not None:
        weight = weight.astype(compute_dtype)
    return weight.T, bias.reshape(1, -1)


# ---------------------------------------------------------------------------
# Tile selection
# ---------------------------------------------------------------------------
def _choose_tiles(batch, num_classes, relation_dim, in_itemsize, tm, tn):
    """Pick (tm, tn) obeying Mosaic block rules (divisible by (8,128) or equal
    to the full dim) and a ~24 MiB double-buffered working-set budget so the
    tiles fit v7x's 64 MiB/TC VMEM without raising limits."""
    if tn is None:
        # Whole class axis as one lane-resident block when small enough
        # (constant index_map -> weight DMA'd exactly once); otherwise a
        # lane-dense 1024-wide tile with a masked ragged tail.
        tn = num_classes if num_classes <= 2048 else 1024
    if tm is None:
        tm = min(512, batch)
        if tm == batch and batch >= 128 and num_classes <= tn:
            # Grid would degenerate to (1, 1): split the batch so v7x's second
            # TensorCore gets a parallel block.
            tm = _round_up(pl.cdiv(batch, 2), 8)

    budget = 24 << 20

    def working_set(tm_, tn_):
        in_bytes = (tm_ * relation_dim + relation_dim * tn_) * in_itemsize
        out_bytes = tm_ * tn_ * 4
        return 2 * (in_bytes + out_bytes)          # double-buffered

    while working_set(tm, tn) > budget and tm % 16 == 0 and tm > 64:
        tm //= 2
    while working_set(tm, tn) > budget and tn % 256 == 0 and tn > 256:
        tn //= 2
    return tm, tn


# ---------------------------------------------------------------------------
# pallas_call wrapper (expects pre-prepped w = weight.T, bias2d = bias[None,:])
# ---------------------------------------------------------------------------
def selector_logits(x, w, bias2d, *, tm=None, tn=None, out_dtype=jnp.float32):
    batch, relation_dim = x.shape
    rd2, num_classes = w.shape
    assert rd2 == relation_dim
    assert bias2d.shape == (1, num_classes)

    tm, tn = _choose_tiles(batch, num_classes, relation_dim,
                           jnp.dtype(x.dtype).itemsize, tm, tn)
    gm = pl.cdiv(batch, tm)
    gn = pl.cdiv(num_classes, tn)

    x_bytes = batch * relation_dim * jnp.dtype(x.dtype).itemsize
    w_bytes = relation_dim * num_classes * jnp.dtype(w.dtype).itemsize
    b_bytes = num_classes * jnp.dtype(bias2d.dtype).itemsize
    o_bytes = batch * num_classes * jnp.dtype(out_dtype).itemsize
    cost = pl.CostEstimate(flops=2 * batch * num_classes * relation_dim,
                           transcendentals=0,
                           bytes_accessed=x_bytes + w_bytes + b_bytes + o_bytes)

    if gn == 1 or w_bytes <= x_bytes:
        # Class axis innermost: the x tile stays resident across the inner
        # loop; with gn == 1 the weight's block index is constant, so the
        # whole weight is DMA'd exactly once.
        grid = (gm, gn)
        x_map = lambda i, j: (i, 0)
        w_map = lambda i, j: (0, j)
        b_map = lambda i, j: (0, j)
        o_map = lambda i, j: (i, j)
    else:
        # Batch axis innermost: the (larger) weight tile stays resident and
        # the small x tile is the one re-streamed.
        grid = (gn, gm)
        x_map = lambda j, i: (i, 0)
        w_map = lambda j, i: (0, j)
        b_map = lambda j, i: (0, j)
        o_map = lambda j, i: (i, j)

    return pl.pallas_call(
        selector_logits_kernel,
        out_shape=jax.ShapeDtypeStruct((batch, num_classes), out_dtype),
        grid=grid,
        in_specs=[
            pl.BlockSpec((tm, relation_dim), x_map),
            pl.BlockSpec((relation_dim, tn), w_map),
            pl.BlockSpec((1, tn), b_map),
        ],
        out_specs=pl.BlockSpec((tm, tn), o_map),
        compiler_params=pltpu.CompilerParams(
            dimension_semantics=("parallel", "parallel")),
        cost_estimate=cost,
    )(x, w, bias2d)


# ---------------------------------------------------------------------------
# Drop-in equivalent of Selector.get_logits (PyTorch parameter layout)
# ---------------------------------------------------------------------------
def selector_get_logits(x, weight, bias, *, tm=None, tn=None,
                        compute_dtype=None, out_dtype=jnp.float32):
    """x: (batch, relation_dim); weight: (num_classes, relation_dim);
    bias: (num_classes,).  Returns (x, w, logits) like the PyTorch module,
    where w = weight.T is exactly the array the kernel consumed."""
    w, b2 = prepare_selector_params(weight, bias, compute_dtype)
    x_in = x if compute_dtype is None else x.astype(compute_dtype)
    logits = selector_logits(x_in, w, b2, tm=tm, tn=tn, out_dtype=out_dtype)
    return x, w, logits


def init_selector_params(key, num_classes, relation_dim):
    """Matches Selector.init_weights(): xavier_uniform_ weight, normal_ bias."""
    k_w, k_b = jax.random.split(key)
    limit = math.sqrt(6.0 / (num_classes + relation_dim))
    weight = jax.random.uniform(k_w, (num_classes, relation_dim),
                                dtype=jnp.float32, minval=-limit, maxval=limit)
    bias = jax.random.normal(k_b, (num_classes,), dtype=jnp.float32)
    return weight, bias


if __name__ == "__main__":
    # Small shapes consistent with the module: num_classes=8, relation_dim=32,
    # batch=16 (config.num_classes / relation_dim / bag-level batch).
    num_classes, relation_dim, batch = 8, 32, 16

    key = jax.random.PRNGKey(0)
    k_x, k_p = jax.random.split(key)
    weight, bias = init_selector_params(k_p, num_classes, relation_dim)
    x = jax.random.normal(k_x, (batch, relation_dim), dtype=jnp.float32)

    x_out, w_out, logits = selector_get_logits(x, weight, bias)
    jax.block_until_ready(logits)

    # Accurate f32 reference (kernel uses Precision.HIGHEST on the MXU).
    ref = jnp.dot(x, weight.T, preferred_element_type=jnp.float32,
                  precision=jax.lax.Precision.HIGHEST) + bias

    assert logits.shape == (batch, num_classes)
    assert x_out.shape == x.shape
    assert w_out.shape == (relation_dim, num_classes)
    assert jnp.allclose(w_out, weight.T)
    assert jnp.allclose(logits, ref, atol=1e-3, rtol=1e-3), \
        f"max abs err {float(jnp.max(jnp.abs(logits - ref)))}"

    # TODO(synk): forward()/test() raise NotImplementedError in the PyTorch
    # module (and dropout is unused by get_logits), so only get_logits is
    # implemented here.
    print("KERNEL_OK")
</pallas_src>

<mosaic_0001>
module attributes {stable_mosaic.version = 11 : i64} {
  func.func @selector_logits_kernel(%arg0: i32, %arg1: i32, %arg2: memref<16x32xf32, #tpu.memory_space<vmem>>, %arg3: memref<32x8xf32, #tpu.memory_space<vmem>>, %arg4: memref<1x8xf32, #tpu.memory_space<vmem>>, %arg5: memref<16x8xf32, #tpu.memory_space<vmem>>) attributes {dimension_semantics = [#tpu.dimension_semantics<parallel>, #tpu.dimension_semantics<parallel>], iteration_bounds = array<i64: 1, 1>, scalar_prefetch = 0 : i64, scratch_operands = 0 : i64, tpu.core_type = #tpu.core_type<tc>, window_params = [{transform_indices = @transform_0, window_bounds = array<i64: 16, 32>}, {transform_indices = @transform_1, window_bounds = array<i64: 32, 8>}, {transform_indices = @transform_2, window_bounds = array<i64: 1, 8>}, {transform_indices = @transform_3, window_bounds = array<i64: 16, 8>}]} {
    %c0 = arith.constant 0 : index
    %c0_0 = arith.constant 0 : index
    %0 = vector.load %arg2[%c0, %c0_0] : memref<16x32xf32, #tpu.memory_space<vmem>>, vector<16x32xf32>
    %c0_1 = arith.constant 0 : index
    %c0_2 = arith.constant 0 : index
    %1 = vector.load %arg3[%c0_1, %c0_2] : memref<32x8xf32, #tpu.memory_space<vmem>>, vector<32x8xf32>
    %cst = arith.constant dense<0.000000e+00> : vector<16x8xf32>
    %2 = tpu.matmul %0, %1, %cst {dimension_numbers = #tpu.dot_dimension_numbers<[1], [0], [0], [1], [0, 0, 1, 1], [], []>, precision = #tpu.contract_precision<fp32>} : vector<16x32xf32>, vector<32x8xf32>, vector<16x8xf32> -> vector<16x8xf32>
    %c0_3 = arith.constant 0 : index
    %c0_4 = arith.constant 0 : index
    %3 = vector.load %arg4[%c0_3, %c0_4] : memref<1x8xf32, #tpu.memory_space<vmem>>, vector<1x8xf32>
    %4 = vector.broadcast %3 : vector<1x8xf32> to vector<16x8xf32>
    %5 = arith.addf %2, %4 : vector<16x8xf32>
    %c0_5 = arith.constant 0 : index
    %c0_6 = arith.constant 0 : index
    %6 = vector.load %arg5[%c0_5, %c0_6] : memref<16x8xf32, #tpu.memory_space<vmem>>, vector<16x8xf32>
    tpu.vector_store %arg5[%c0_5, %c0_6], %5 {strides = array<i32>} : memref<16x8xf32, #tpu.memory_space<vmem>>, vector<16x8xf32>,
    return
  }
  func.func @transform_0(%arg0: i32, %arg1: i32) -> (i32, i32) {
    %c0_i32 = arith.constant 0 : i32
    %c0_i32_0 = arith.constant 0 : i32
    return %arg0, %c0_i32 : i32, i32
  }
  func.func @transform_1(%arg0: i32, %arg1: i32) -> (i32, i32) {
    %c0_i32 = arith.constant 0 : i32
    %c0_i32_0 = arith.constant 0 : i32
    return %c0_i32, %arg1 : i32, i32
  }
  func.func @transform_2(%arg0: i32, %arg1: i32) -> (i32, i32) {
    %c0_i32 = arith.constant 0 : i32
    %c0_i32_0 = arith.constant 0 : i32
    return %c0_i32, %arg1 : i32, i32
  }
  func.func @transform_3(%arg0: i32, %arg1: i32) -> (i32, i32) {
    %c0_i32 = arith.constant 0 : i32
    return %arg0, %arg1 : i32, i32
  }
}

</mosaic_0001>

<llo_original>
// kernel: tpu_custom_call.1
$region0: #{tpu_custom_call.1}
  #allocation0 [shape = 'u32[]', space=smem, size = 0x4, offset = 0x4, fixed_abs, tag = 'smem constant byte address 0x4 - core index']
  #allocation1 [shape = 'u32[144,128]{1,0:T(1,128)}', space=vmem, size = 0x12000, scoped, tag = 'internal scratch']
  %s0 = inlined_call_operand.vmem [shape: f32[16,32], index: 0, kind: input, shape index: {}]
  %s1 = inlined_call_operand.vmem [shape: f32[32,8], index: 1, kind: input, shape index: {}]
  %s2 = inlined_call_operand.vmem [shape: f32[1,8], index: 2, kind: input, shape index: {}]
  %s3 = inlined_call_operand.vmem [shape: f32[16,8], index: 3, kind: output, shape index: {}]
  %s4 = sld [smem:[#allocation0]]
  $region22: #{tpu_custom_call.1} parent=0
    _
  %s6 = ssub.s32 1, %s4
  %s7 = scalar_select 0, %s6, %s4
  // Predicated region
  $region2: #{tpu_custom_call.1} parent=0 // pred_check
    _
  $region3: #{tpu_custom_call.1} parent=0 // pred_check_branch
    %9 = sbr.rel (0) target = $region5
  $region4: #{tpu_custom_call.1} parent=0 // pred_region
    _
  $region5: #{tpu_custom_call.1} parent=0 // pred_fallthru
    _
  // Predicated region
  $region6: #{tpu_custom_call.1} parent=0 // pred_check
    _
  $region7: #{tpu_custom_call.1} parent=0 // pred_check_branch
    %11 = sbr.rel (0) target = $region9
  $region8: #{tpu_custom_call.1} parent=0 // pred_region
    _
  $region9: #{tpu_custom_call.1} parent=0 // pred_fallthru
    _
  // Predicated region
  $region10: #{tpu_custom_call.1} parent=0 // pred_check
    _
  $region11: #{tpu_custom_call.1} parent=0 // pred_check_branch
    %13 = sbr.rel (0) target = $region13
  $region12: #{tpu_custom_call.1} parent=0 // pred_region
    _
  $region13: #{tpu_custom_call.1} parent=0 // pred_fallthru
    _
  %v14 = vld [vmem:[%s0] sm:$0xff]
  %v15 = vld [vmem:[%s0 + $0x8] sm:$0xff]
  %v16 = vld [vmem:[%s1] sm:$0xff]
  %v17 = vld [vmem:[%s1 + $0x8] sm:$0xff]
  %v18 = vld [vmem:[%s1 + $0x10] sm:$0xff]
  %v19 = vld [vmem:[%s1 + $0x18] sm:$0xff]
  %v20 = vld [vmem:[%s2] sm:$0x1]
  %v22 = vlaneseq
  %v23 = vshrl.u32 %v22, 7
  %v24 = vsub.s32 0, %v23
  %v25 = vrot.slane %v20, %v24
  %vm27 = vcmask 261120
  %v29 = vsel %vm27, %v14, 0
  %v32 = vsel %vm27, %v15, 0
  %34 = vmatprep.subr.mxu0 0.0
  %v35 = vand.u32 %v16, 4294901760
  %36 = vmatpush1.msra.mxu0 %v35
  %37 = vmatprep.subr.mxu0 0.0
  %v38 = vand.u32 %v17, 4294901760
  %39 = vmatpush1.msra.mxu0 %v38
  %40 = vmatprep.subr.mxu0 0.0
  %v41 = vand.u32 %v18, 4294901760
  %42 = vmatpush1.msra.mxu0 %v41
  %43 = vmatprep.subr.mxu0 0.0
  %v44 = vand.u32 %v19, 4294901760
  %45 = vmatpush1.msra.mxu0 %v44
  %46 = vmatprep.subr.mxu0 0.0
  %47 = vmatpush1.msra.mxu0 0.0
  %48 = vmatprep.subr.mxu0 0.0
  %49 = vmatpush1.msra.mxu0 0.0
  %50 = vmatprep.subr.mxu0 0.0
  %51 = vmatpush1.msra.mxu0 0.0
  %52 = vmatprep.subr.mxu0 0.0
  %53 = vmatpush1.msra.mxu0 0.0
  %54 = vmatprep.subr.mxu0 0.0
  %55 = vmatpush1.msra.mxu0 0.0
  %56 = vmatprep.subr.mxu0 0.0
  %57 = vmatpush1.msra.mxu0 0.0
  %58 = vmatprep.subr.mxu0 0.0
  %59 = vmatpush1.msra.mxu0 0.0
  %60 = vmatprep.subr.mxu0 0.0
  %61 = vmatpush1.msra.mxu0 0.0
  %62 = vmatprep.subr.mxu0 0.0
  %63 = vmatpush1.msra.mxu0 0.0
  %64 = vmatprep.subr.mxu0 0.0
  %65 = vmatpush1.msra.mxu0 0.0
  %66 = vmatprep.subr.mxu0 0.0
  %67 = vmatpush1.msra.mxu0 0.0
  %68 = vmatprep.subr.mxu0 0.0
  %69 = vmatpush1.msra.mxu0 0.0
  %70 = vmatprep.subr.mxu0 0.0
  %71 = vmatpush1.msra.mxu0 0.0
  %72 = vmatprep.subr.mxu0 0.0
  %73 = vmatpush1.msra.mxu0 0.0
  %74 = vmatprep.subr.mxu0 0.0
  %75 = vmatpush1.msra.mxu0 0.0
  %76 = vmatprep.subr.mxu0 0.0
  %77 = vmatpush1.msra.mxu0 0.0
  %78 = vmatprep.subr.mxu0 0.0
  %79 = vmatpush1.msra.mxu0 0.0
  %80 = vmatprep.subr.mxu0 0.0
  %81 = vmatpush1.msra.mxu0 0.0
  %82 = vmatprep.subr.mxu0 0.0
  %83 = vmatpush1.msra.mxu0 0.0
  %84 = vmatprep.subr.mxu0 0.0
  %85 = vmatpush1.msra.mxu0 0.0
  %86 = vmatprep.subr.mxu0 0.0
  %87 = vmatpush1.msra.mxu0 0.0
  %88 = vmatprep.subr.mxu0 0.0
  %89 = vmatpush1.msra.mxu0 0.0
  %90 = vmatprep.subr.mxu0 0.0
  %91 = vmatpush1.msra.mxu0 0.0
  %92 = vmatprep.subr.mxu0 0.0
  %93 = vmatpush1.msra.mxu0 0.0
  %94 = vmatprep.subr.mxu0 0.0
  %95 = vmatpush1.msra.mxu0 0.0
  %96 = vmatprep.subr.mxu0 0.0
  %97 = vmatpush1.msra.mxu0 0.0
  %98 = vmatprep.subr.mxu0 0.0
  %99 = vmatpush1.msra.mxu0 0.0
  %100 = vmatprep.subr.mxu0 0.0
  %101 = vmatpush1.msra.mxu0 0.0
  %102 = vmatprep.mubr.f32.mxu0 0.0
  %v103 = vand.u32 %v29, 4294901760
  %v104 = vsub.f32 %v29, %v103
  %v105 = vand.u32 %v104, 4294901760
  %v106 = vsub.f32 %v104, %v105
  %v107 = vand.u32 %v106, 4294901760
  %108 = vmatmul.mubr.f32.gmra.mrb[0].mxu0 %v107
  %v109 = vpop.f32.mrb[0].mxu0
  %v110 = vadd.f32 %v25, %v109
  %v111 = vpop.f32.mrb[0].mxu0
  %112 = vmatprep.mubr.f32.mxu0 0.0
  %v113 = vand.u32 %v32, 4294901760
  %v114 = vsub.f32 %v32, %v113
  %v115 = vand.u32 %v114, 4294901760
  %v116 = vsub.f32 %v114, %v115
  %v117 = vand.u32 %v116, 4294901760
  %118 = vmatmul.mubr.f32.gmra.mrb[0].mxu0 %v117
  %v119 = vpop.f32.mrb[0].mxu0
  %v120 = vadd.f32 %v25, %v119
  %v121 = vpop.f32.mrb[0].mxu0
  %122 = vdwg.mxu0
  %123 = vmatprep.subr.mxu0 0.0
  %v124 = vand.u32 %v16, 4294901760
  %v125 = vsub.f32 %v16, %v124
  %v126 = vand.u32 %v125, 4294901760
  %v127 = vsub.f32 %v125, %v126
  %v128 = vand.u32 %v127, 4294901760
  %129 = vmatpush1.msra.mxu0 %v128
  %130 = vmatprep.subr.mxu0 0.0
  %v131 = vand.u32 %v17, 4294901760
  %v132 = vsub.f32 %v17, %v131
  %v133 = vand.u32 %v132, 4294901760
  %v134 = vsub.f32 %v132, %v133
  %v135 = vand.u32 %v134, 4294901760
  %136 = vmatpush1.msra.mxu0 %v135
  %137 = vmatprep.subr.mxu0 0.0
  %v138 = vand.u32 %v18, 4294901760
  %v139 = vsub.f32 %v18, %v138
  %v140 = vand.u32 %v139, 4294901760
  %v141 = vsub.f32 %v139, %v140
  %v142 = vand.u32 %v141, 4294901760
  %143 = vmatpush1.msra.mxu0 %v142
  %144 = vmatprep.subr.mxu0 0.0
  %v145 = vand.u32 %v19, 4294901760
  %v146 = vsub.f32 %v19, %v145
  %v147 = vand.u32 %v146, 4294901760
  %v148 = vsub.f32 %v146, %v147
  %v149 = vand.u32 %v148, 4294901760
  %150 = vmatpush1.msra.mxu0 %v149
  %151 = vmatprep.subr.mxu0 0.0
  %152 = vmatpush1.msra.mxu0 0.0
  %153 = vmatprep.subr.mxu0 0.0
  %154 = vmatpush1.msra.mxu0 0.0
  %155 = vmatprep.subr.mxu0 0.0
  %156 = vmatpush1.msra.mxu0 0.0
  %157 = vmatprep.subr.mxu0 0.0
  %158 = vmatpush1.msra.mxu0 0.0
  %159 = vmatprep.subr.mxu0 0.0
  %160 = vmatpush1.msra.mxu0 0.0
  %161 = vmatprep.subr.mxu0 0.0
  %162 = vmatpush1.msra.mxu0 0.0
  %163 = vmatprep.subr.mxu0 0.0
  %164 = vmatpush1.msra.mxu0 0.0
  %165 = vmatprep.subr.mxu0 0.0
  %166 = vmatpush1.msra.mxu0 0.0
  %167 = vmatprep.subr.mxu0 0.0
  %168 = vmatpush1.msra.mxu0 0.0
  %169 = vmatprep.subr.mxu0 0.0
  %170 = vmatpush1.msra.mxu0 0.0
  %171 = vmatprep.subr.mxu0 0.0
  %172 = vmatpush1.msra.mxu0 0.0
  %173 = vmatprep.subr.mxu0 0.0
  %174 = vmatpush1.msra.mxu0 0.0
  %175 = vmatprep.subr.mxu0 0.0
  %176 = vmatpush1.msra.mxu0 0.0
  %177 = vmatprep.subr.mxu0 0.0
  %178 = vmatpush1.msra.mxu0 0.0
  %179 = vmatprep.subr.mxu0 0.0
  %180 = vmatpush1.msra.mxu0 0.0
  %181 = vmatprep.subr.mxu0 0.0
  %182 = vmatpush1.msra.mxu0 0.0
  %183 = vmatprep.subr.mxu0 0.0
  %184 = vmatpush1.msra.mxu0 0.0
  %185 = vmatprep.subr.mxu0 0.0
  %186 = vmatpush1.msra.mxu0 0.0
  %187 = vmatprep.subr.mxu0 0.0
  %188 = vmatpush1.msra.mxu0 0.0
  %189 = vmatprep.subr.mxu0 0.0
  %190 = vmatpush1.msra.mxu0 0.0
  %191 = vmatprep.subr.mxu0 0.0
  %192 = vmatpush1.msra.mxu0 0.0
  %193 = vmatprep.subr.mxu0 0.0
  %194 = vmatpush1.msra.mxu0 0.0
  %195 = vmatprep.subr.mxu0 0.0
  %196 = vmatpush1.msra.mxu0 0.0
  %197 = vmatprep.subr.mxu0 0.0
  %198 = vmatpush1.msra.mxu0 0.0
  %199 = vmatprep.subr.mxu0 0.0
  %200 = vmatpush1.msra.mxu0 0.0
  %201 = vmatprep.subr.mxu0 0.0
  %202 = vmatpush1.msra.mxu0 0.0
  %203 = vmatprep.subr.mxu0 0.0
  %204 = vmatpush1.msra.mxu0 0.0
  %205 = vmatprep.subr.mxu0 0.0
  %206 = vmatpush1.msra.mxu0 0.0
  %207 = vmatprep.mubr.f32.mxu0 0.0
  %v208 = vand.u32 %v29, 4294901760
  %209 = vmatmul.mubr.f32.gmra.mrb[0].mxu0 %v208
  %v210 = vpop.f32.mrb[0].mxu0
  %v211 = vadd.f32 %v110, %v210
  %v212 = vpop.f32.mrb[0].mxu0
  %213 = vmatprep.mubr.f32.mxu0 0.0
  %v214 = vand.u32 %v32, 4294901760
  %215 = vmatmul.mubr.f32.gmra.mrb[0].mxu0 %v214
  %v216 = vpop.f32.mrb[0].mxu0
  %v217 = vadd.f32 %v120, %v216
  %v218 = vpop.f32.mrb[0].mxu0
  %219 = vdwg.mxu0
  %220 = vmatprep.subr.mxu0 0.0
  %v221 = vand.u32 %v16, 4294901760
  %v222 = vsub.f32 %v16, %v221
  %223 = vmatpush1.msra.mxu0 %v222
  %224 = vmatprep.subr.mxu0 0.0
  %v225 = vand.u32 %v17, 4294901760
  %v226 = vsub.f32 %v17, %v225
  %227 = vmatpush1.msra.mxu0 %v226
  %228 = vmatprep.subr.mxu0 0.0
  %v229 = vand.u32 %v18, 4294901760
  %v230 = vsub.f32 %v18, %v229
  %231 = vmatpush1.msra.mxu0 %v230
  %232 = vmatprep.subr.mxu0 0.0
  %v233 = vand.u32 %v19, 4294901760
  %v234 = vsub.f32 %v19, %v233
  %235 = vmatpush1.msra.mxu0 %v234
  %236 = vmatprep.subr.mxu0 0.0
  %237 = vmatpush1.msra.mxu0 0.0
  %238 = vmatprep.subr.mxu0 0.0
  %239 = vmatpush1.msra.mxu0 0.0
  %240 = vmatprep.subr.mxu0 0.0
  %241 = vmatpush1.msra.mxu0 0.0
  %242 = vmatprep.subr.mxu0 0.0
  %243 = vmatpush1.msra.mxu0 0.0
  %244 = vmatprep.subr.mxu0 0.0
  %245 = vmatpush1.msra.mxu0 0.0
  %246 = vmatprep.subr.mxu0 0.0
  %247 = vmatpush1.msra.mxu0 0.0
  %248 = vmatprep.subr.mxu0 0.0
  %249 = vmatpush1.msra.mxu0 0.0
  %250 = vmatprep.subr.mxu0 0.0
  %251 = vmatpush1.msra.mxu0 0.0
  %252 = vmatprep.subr.mxu0 0.0
  %253 = vmatpush1.msra.mxu0 0.0
  %254 = vmatprep.subr.mxu0 0.0
  %255 = vmatpush1.msra.mxu0 0.0
  %256 = vmatprep.subr.mxu0 0.0
  %257 = vmatpush1.msra.mxu0 0.0
  %258 = vmatprep.subr.mxu0 0.0
  %259 = vmatpush1.msra.mxu0 0.0
  %260 = vmatprep.subr.mxu0 0.0
  %261 = vmatpush1.msra.mxu0 0.0
  %262 = vmatprep.subr.mxu0 0.0
  %263 = vmatpush1.msra.mxu0 0.0
  %264 = vmatprep.subr.mxu0 0.0
  %265 = vmatpush1.msra.mxu0 0.0
  %266 = vmatprep.subr.mxu0 0.0
  %267 = vmatpush1.msra.mxu0 0.0
  %268 = vmatprep.subr.mxu0 0.0
  %269 = vmatpush1.msra.mxu0 0.0
  %270 = vmatprep.subr.mxu0 0.0
  %271 = vmatpush1.msra.mxu0 0.0
  %272 = vmatprep.subr.mxu0 0.0
  %273 = vmatpush1.msra.mxu0 0.0
  %274 = vmatprep.subr.mxu0 0.0
  %275 = vmatpush1.msra.mxu0 0.0
  %276 = vmatprep.subr.mxu0 0.0
  %277 = vmatpush1.msra.mxu0 0.0
  %278 = vmatprep.subr.mxu0 0.0
  %279 = vmatpush1.msra.mxu0 0.0
  %280 = vmatprep.subr.mxu0 0.0
  %281 = vmatpush1.msra.mxu0 0.0
  %282 = vmatprep.subr.mxu0 0.0
  %283 = vmatpush1.msra.mxu0 0.0
  %284 = vmatprep.subr.mxu0 0.0
  %285 = vmatpush1.msra.mxu0 0.0
  %286 = vmatprep.subr.mxu0 0.0
  %287 = vmatpush1.msra.mxu0 0.0
  %288 = vmatprep.subr.mxu0 0.0
  %289 = vmatpush1.msra.mxu0 0.0
  %290 = vmatprep.subr.mxu0 0.0
  %291 = vmatpush1.msra.mxu0 0.0
  %292 = vmatprep.mubr.f32.mxu0 0.0
  %v293 = vand.u32 %v29, 4294901760
  %v294 = vsub.f32 %v29, %v293
  %295 = vmatmul.mubr.f32.gmra.mrb[0].mxu0 %v294
  %v296 = vpop.f32.mrb[0].mxu0
  %v297 = vadd.f32 %v211, %v296
  %v298 = vpop.f32.mrb[0].mxu0
  %299 = vmatprep.mubr.f32.mxu0 0.0
  %v300 = vand.u32 %v32, 4294901760
  %v301 = vsub.f32 %v32, %v300
  %302 = vmatmul.mubr.f32.gmra.mrb[0].mxu0 %v301
  %v303 = vpop.f32.mrb[0].mxu0
  %v304 = vadd.f32 %v217, %v303
  %v305 = vpop.f32.mrb[0].mxu0
  %306 = vdwg.mxu0
  %307 = vmatprep.subr.mxu0 0.0
  %v308 = vand.u32 %v16, 4294901760
  %309 = vmatpush1.msra.mxu0 %v308
  %310 = vmatprep.subr.mxu0 0.0
  %v311 = vand.u32 %v17, 4294901760
  %312 = vmatpush1.msra.mxu0 %v311
  %313 = vmatprep.subr.mxu0 0.0
  %v314 = vand.u32 %v18, 4294901760
  %315 = vmatpush1.msra.mxu0 %v314
  %316 = vmatprep.subr.mxu0 0.0
  %v317 = vand.u32 %v19, 4294901760
  %318 = vmatpush1.msra.mxu0 %v317
  %319 = vmatprep.subr.mxu0 0.0
  %320 = vmatpush1.msra.mxu0 0.0
  %321 = vmatprep.subr.mxu0 0.0
  %322 = vmatpush1.msra.mxu0 0.0
  %323 = vmatprep.subr.mxu0 0.0
  %324 = vmatpush1.msra.mxu0 0.0
  %325 = vmatprep.subr.mxu0 0.0
  %326 = vmatpush1.msra.mxu0 0.0
  %327 = vmatprep.subr.mxu0 0.0
  %328 = vmatpush1.msra.mxu0 0.0
  %329 = vmatprep.subr.mxu0 0.0
  %330 = vmatpush1.msra.mxu0 0.0
  %331 = vmatprep.subr.mxu0 0.0
  %332 = vmatpush1.msra.mxu0 0.0
  %333 = vmatprep.subr.mxu0 0.0
  %334 = vmatpush1.msra.mxu0 0.0
  %335 = vmatprep.subr.mxu0 0.0
  %336 = vmatpush1.msra.mxu0 0.0
  %337 = vmatprep.subr.mxu0 0.0
  %338 = vmatpush1.msra.mxu0 0.0
  %339 = vmatprep.subr.mxu0 0.0
  %340 = vmatpush1.msra.mxu0 0.0
  %341 = vmatprep.subr.mxu0 0.0
  %342 = vmatpush1.msra.mxu0 0.0
  %343 = vmatprep.subr.mxu0 0.0
  %344 = vmatpush1.msra.mxu0 0.0
  %345 = vmatprep.subr.mxu0 0.0
  %346 = vmatpush1.msra.mxu0 0.0
  %347 = vmatprep.subr.mxu0 0.0
  %348 = vmatpush1.msra.mxu0 0.0
  %349 = vmatprep.subr.mxu0 0.0
  %350 = vmatpush1.msra.mxu0 0.0
  %351 = vmatprep.subr.mxu0 0.0
  %352 = vmatpush1.msra.mxu0 0.0
  %353 = vmatprep.subr.mxu0 0.0
  %354 = vmatpush1.msra.mxu0 0.0
  %355 = vmatprep.subr.mxu0 0.0
  %356 = vmatpush1.msra.mxu0 0.0
  %357 = vmatprep.subr.mxu0 0.0
  %358 = vmatpush1.msra.mxu0 0.0
  %359 = vmatprep.subr.mxu0 0.0
  %360 = vmatpush1.msra.mxu0 0.0
  %361 = vmatprep.subr.mxu0 0.0
  %362 = vmatpush1.msra.mxu0 0.0
  %363 = vmatprep.subr.mxu0 0.0
  %364 = vmatpush1.msra.mxu0 0.0
  %365 = vmatprep.subr.mxu0 0.0
  %366 = vmatpush1.msra.mxu0 0.0
  %367 = vmatprep.subr.mxu0 0.0
  %368 = vmatpush1.msra.mxu0 0.0
  %369 = vmatprep.subr.mxu0 0.0
  %370 = vmatpush1.msra.mxu0 0.0
  %371 = vmatprep.subr.mxu0 0.0
  %372 = vmatpush1.msra.mxu0 0.0
  %373 = vmatprep.subr.mxu0 0.0
  %374 = vmatpush1.msra.mxu0 0.0
  %375 = vmatprep.mubr.f32.mxu0 0.0
  %v376 = vand.u32 %v29, 4294901760
  %v377 = vsub.f32 %v29, %v376
  %v378 = vand.u32 %v377, 4294901760
  %379 = vmatmul.mubr.f32.gmra.mrb[0].mxu0 %v378
  %v380 = vpop.f32.mrb[0].mxu0
  %v381 = vadd.f32 %v297, %v380
  %v382 = vpop.f32.mrb[0].mxu0
  %383 = vmatprep.mubr.f32.mxu0 0.0
  %v384 = vand.u32 %v32, 4294901760
  %v385 = vsub.f32 %v32, %v384
  %v386 = vand.u32 %v385, 4294901760
  %387 = vmatmul.mubr.f32.gmra.mrb[0].mxu0 %v386
  %v388 = vpop.f32.mrb[0].mxu0
  %v389 = vadd.f32 %v304, %v388
  %v390 = vpop.f32.mrb[0].mxu0
  %391 = vdwg.mxu0
  %392 = vmatprep.subr.mxu0 0.0
  %v393 = vand.u32 %v16, 4294901760
  %v394 = vsub.f32 %v16, %v393
  %v395 = vand.u32 %v394, 4294901760
  %396 = vmatpush1.msra.mxu0 %v395
  %397 = vmatprep.subr.mxu0 0.0
  %v398 = vand.u32 %v17, 4294901760
  %v399 = vsub.f32 %v17, %v398
  %v400 = vand.u32 %v399, 4294901760
  %401 = vmatpush1.msra.mxu0 %v400
  %402 = vmatprep.subr.mxu0 0.0
  %v403 = vand.u32 %v18, 4294901760
  %v404 = vsub.f32 %v18, %v403
  %v405 = vand.u32 %v404, 4294901760
  %406 = vmatpush1.msra.mxu0 %v405
  %407 = vmatprep.subr.mxu0 0.0
  %v408 = vand.u32 %v19, 4294901760
  %v409 = vsub.f32 %v19, %v408
  %v410 = vand.u32 %v409, 4294901760
  %411 = vmatpush1.msra.mxu0 %v410
  %412 = vmatprep.subr.mxu0 0.0
  %413 = vmatpush1.msra.mxu0 0.0
  %414 = vmatprep.subr.mxu0 0.0
  %415 = vmatpush1.msra.mxu0 0.0
  %416 = vmatprep.subr.mxu0 0.0
  %417 = vmatpush1.msra.mxu0 0.0
  %418 = vmatprep.subr.mxu0 0.0
  %419 = vmatpush1.msra.mxu0 0.0
  %420 = vmatprep.subr.mxu0 0.0
  %421 = vmatpush1.msra.mxu0 0.0
  %422 = vmatprep.subr.mxu0 0.0
  %423 = vmatpush1.msra.mxu0 0.0
  %424 = vmatprep.subr.mxu0 0.0
  %425 = vmatpush1.msra.mxu0 0.0
  %426 = vmatprep.subr.mxu0 0.0
  %427 = vmatpush1.msra.mxu0 0.0
  %428 = vmatprep.subr.mxu0 0.0
  %429 = vmatpush1.msra.mxu0 0.0
  %430 = vmatprep.subr.mxu0 0.0
  %431 = vmatpush1.msra.mxu0 0.0
  %432 = vmatprep.subr.mxu0 0.0
  %433 = vmatpush1.msra.mxu0 0.0
  %434 = vmatprep.subr.mxu0 0.0
  %435 = vmatpush1.msra.mxu0 0.0
  %436 = vmatprep.subr.mxu0 0.0
  %437 = vmatpush1.msra.mxu0 0.0
  %438 = vmatprep.subr.mxu0 0.0
  %439 = vmatpush1.msra.mxu0 0.0
  %440 = vmatprep.subr.mxu0 0.0
  %441 = vmatpush1.msra.mxu0 0.0
  %442 = vmatprep.subr.mxu0 0.0
  %443 = vmatpush1.msra.mxu0 0.0
  %444 = vmatprep.subr.mxu0 0.0
  %445 = vmatpush1.msra.mxu0 0.0
  %446 = vmatprep.subr.mxu0 0.0
  %447 = vmatpush1.msra.mxu0 0.0
  %448 = vmatprep.subr.mxu0 0.0
  %449 = vmatpush1.msra.mxu0 0.0
  %450 = vmatprep.subr.mxu0 0.0
  %451 = vmatpush1.msra.mxu0 0.0
  %452 = vmatprep.subr.mxu0 0.0
  %453 = vmatpush1.msra.mxu0 0.0
  %454 = vmatprep.subr.mxu0 0.0
  %455 = vmatpush1.msra.mxu0 0.0
  %456 = vmatprep.subr.mxu0 0.0
  %457 = vmatpush1.msra.mxu0 0.0
  %458 = vmatprep.subr.mxu0 0.0
  %459 = vmatpush1.msra.mxu0 0.0
  %460 = vmatprep.subr.mxu0 0.0
  %461 = vmatpush1.msra.mxu0 0.0
  %462 = vmatprep.subr.mxu0 0.0
  %463 = vmatpush1.msra.mxu0 0.0
  %464 = vmatprep.subr.mxu0 0.0
  %465 = vmatpush1.msra.mxu0 0.0
  %466 = vmatprep.subr.mxu0 0.0
  %467 = vmatpush1.msra.mxu0 0.0
  %468 = vmatprep.mubr.f32.mxu0 0.0
  %v469 = vand.u32 %v29, 4294901760
  %470 = vmatmul.mubr.f32.gmra.mrb[0].mxu0 %v469
  %v471 = vpop.f32.mrb[0].mxu0
  %v472 = vadd.f32 %v381, %v471
  %v473 = vpop.f32.mrb[0].mxu0
  %474 = vmatprep.mubr.f32.mxu0 0.0
  %v475 = vand.u32 %v32, 4294901760
  %476 = vmatmul.mubr.f32.gmra.mrb[0].mxu0 %v475
  %v477 = vpop.f32.mrb[0].mxu0
  %v478 = vadd.f32 %v389, %v477
  %v479 = vpop.f32.mrb[0].mxu0
  %480 = vdwg.mxu0
  %481 = vmatprep.subr.mxu0 0.0
  %v482 = vand.u32 %v16, 4294901760
  %483 = vmatpush1.msra.mxu0 %v482
  %484 = vmatprep.subr.mxu0 0.0
  %v485 = vand.u32 %v17, 4294901760
  %486 = vmatpush1.msra.mxu0 %v485
  %487 = vmatprep.subr.mxu0 0.0
  %v488 = vand.u32 %v18, 4294901760
  %489 = vmatpush1.msra.mxu0 %v488
  %490 = vmatprep.subr.mxu0 0.0
  %v491 = vand.u32 %v19, 4294901760
  %492 = vmatpush1.msra.mxu0 %v491
  %493 = vmatprep.subr.mxu0 0.0
  %494 = vmatpush1.msra.mxu0 0.0
  %495 = vmatprep.subr.mxu0 0.0
  %496 = vmatpush1.msra.mxu0 0.0
  %497 = vmatprep.subr.mxu0 0.0
  %498 = vmatpush1.msra.mxu0 0.0
  %499 = vmatprep.subr.mxu0 0.0
  %500 = vmatpush1.msra.mxu0 0.0
  %501 = vmatprep.subr.mxu0 0.0
  %502 = vmatpush1.msra.mxu0 0.0
  %503 = vmatprep.subr.mxu0 0.0
  %504 = vmatpush1.msra.mxu0 0.0
  %505 = vmatprep.subr.mxu0 0.0
  %506 = vmatpush1.msra.mxu0 0.0
  %507 = vmatprep.subr.mxu0 0.0
  %508 = vmatpush1.msra.mxu0 0.0
  %509 = vmatprep.subr.mxu0 0.0
  %510 = vmatpush1.msra.mxu0 0.0
  %511 = vmatprep.subr.mxu0 0.0
  %512 = vmatpush1.msra.mxu0 0.0
  %513 = vmatprep.subr.mxu0 0.0
  %514 = vmatpush1.msra.mxu0 0.0
  %515 = vmatprep.subr.mxu0 0.0
  %516 = vmatpush1.msra.mxu0 0.0
  %517 = vmatprep.subr.mxu0 0.0
  %518 = vmatpush1.msra.mxu0 0.0
  %519 = vmatprep.subr.mxu0 0.0
  %520 = vmatpush1.msra.mxu0 0.0
  %521 = vmatprep.subr.mxu0 0.0
  %522 = vmatpush1.msra.mxu0 0.0
  %523 = vmatprep.subr.mxu0 0.0
  %524 = vmatpush1.msra.mxu0 0.0
  %525 = vmatprep.subr.mxu0 0.0
  %526 = vmatpush1.msra.mxu0 0.0
  %527 = vmatprep.subr.mxu0 0.0
  %528 = vmatpush1.msra.mxu0 0.0
  %529 = vmatprep.subr.mxu0 0.0
  %530 = vmatpush1.msra.mxu0 0.0
  %531 = vmatprep.subr.mxu0 0.0
  %532 = vmatpush1.msra.mxu0 0.0
  %533 = vmatprep.subr.mxu0 0.0
  %534 = vmatpush1.msra.mxu0 0.0
  %535 = vmatprep.subr.mxu0 0.0
  %536 = vmatpush1.msra.mxu0 0.0
  %537 = vmatprep.subr.mxu0 0.0
  %538 = vmatpush1.msra.mxu0 0.0
  %539 = vmatprep.subr.mxu0 0.0
  %540 = vmatpush1.msra.mxu0 0.0
  %541 = vmatprep.subr.mxu0 0.0
  %542 = vmatpush1.msra.mxu0 0.0
  %543 = vmatprep.subr.mxu0 0.0
  %544 = vmatpush1.msra.mxu0 0.0
  %545 = vmatprep.subr.mxu0 0.0
  %546 = vmatpush1.msra.mxu0 0.0
  %547 = vmatprep.subr.mxu0 0.0
  %548 = vmatpush1.msra.mxu0 0.0
  %549 = vmatprep.mubr.f32.mxu0 0.0
  %v550 = vand.u32 %v29, 4294901760
  %551 = vmatmul.mubr.f32.gmra.mrb[0].mxu0 %v550
  %v552 = vpop.f32.mrb[0].mxu0
  %v553 = vadd.f32 %v472, %v552
  %v554 = vpop.f32.mrb[0].mxu0
  %555 = vmatprep.mubr.f32.mxu0 0.0
  %v556 = vand.u32 %v32, 4294901760
  %557 = vmatmul.mubr.f32.gmra.mrb[0].mxu0 %v556
  %v558 = vpop.f32.mrb[0].mxu0
  %v559 = vadd.f32 %v478, %v558
  %v560 = vpop.f32.mrb[0].mxu0
  %561 = vdwg.mxu0
  %vm562 = vcmask 64512
  %563 = vst.msk [vmem:[%s3] sm:$0xff] %vm562, %v553
  %564 = vst.msk [vmem:[%s3 + $0x8] sm:$0xff] %vm562, %v559
  // Predicated region
  $region14: #{tpu_custom_call.1} parent=0 // pred_check
    _
  $region15: #{tpu_custom_call.1} parent=0 // pred_check_branch
    %566 = sbr.rel (0) target = $region17
  $region16: #{tpu_custom_call.1} parent=0 // pred_region
    _
  $region17: #{tpu_custom_call.1} parent=0 // pred_fallthru
    _
  // Predicated region
  $region18: #{tpu_custom_call.1} parent=0 // pred_check
    _
  $region19: #{tpu_custom_call.1} parent=0 // pred_check_branch
    %568 = sbr.rel (0) target = $region21
  $region20: #{tpu_custom_call.1} parent=0 // pred_region
    _
  $region21: #{tpu_custom_call.1} parent=0 // pred_fallthru
    _

</llo_original>
